<compile_context>
chip_gen: v7x
topology: tpu7x:2x2x1
jax: 0.10.0
libtpu: 0.0.40
codegen_flags: <defaults>
</compile_context>

<pallas_src>
import functools

import jax
import jax.numpy as jnp
from jax.experimental import pallas as pl
from jax.experimental.pallas import tpu as pltpu


def _nonlocal_kernel(x_ref,   # (Bt, C, HWp)  VMEM
                     p_ref,   # (Cp, 10)      VMEM parameter slab
                     o_ref,   # (Bt, C, HWp)  VMEM
                     *, c, hw_true):
    x = x_ref[...]                                  # (Bt, C, HWp) f32
    p = p_ref[...]                                  # (Cp, 10)

    # Per-channel parameters (slice to the true C; slab rows beyond C are 0).
    w_theta = p[:c, 0:1]                            # (C, 1)
    w_phi = p[:c, 1:2]
    w_g = p[:c, 2:3]
    w_W = p[:c, 3:4]
    b_W = p[:c, 4:5]
    bn_scale = p[:c, 5:6]
    bn_shift = p[:c, 6:7]
    # Scalar biases are stored broadcast down columns 7..9; read as (1, 1).
    b_theta = p[0:1, 7:8]
    b_phi = p[0:1, 8:9]
    b_g = p[0:1, 9:10]

    # 1x1 convs (C -> 1) as VPU weighted sums over the C sublanes; results are
    # lane-dense (Bt, HWp) rows.
    theta = jnp.sum(x * w_theta[None], axis=1) + b_theta        # (Bt, HWp)
    phi = jnp.sum(x * w_phi[None], axis=1) + b_phi              # (Bt, HWp)
    g = jnp.sum(x * w_g[None], axis=1) + b_g                    # (Bt, HWp)

    # f = theta @ phi^T is rank-1 (inter_channels == 1), hence
    #   y = (f / HW) @ g  ==  theta * ((phi . g) / HW)
    pg = phi * g                                                # (Bt, HWp)
    if hw_true != x.shape[-1]:
        # Padded lanes are not zero after the bias adds -> mask them out of
        # the reduction; divisor stays at the true HW.
        lane = jax.lax.broadcasted_iota(jnp.int32, pg.shape, 1)
        pg = jnp.where(lane < hw_true, pg, 0.0)
    s = jnp.sum(pg, axis=-1, keepdims=True) * (1.0 / hw_true)   # (Bt, 1)
    y = theta * s                                               # (Bt, HWp)

    # W: Conv1x1 (1 -> C) + eval-mode BatchNorm fold + residual, fused into a
    # single lane-dense store pass over the (Bt, C, HWp) block.
    eff_w = w_W * bn_scale                                      # (C, 1)
    eff_b = b_W * bn_scale + bn_shift                           # (C, 1)
    o_ref[...] = (x + y[:, None, :] * eff_w[None] + eff_b[None]).astype(
        o_ref.dtype)


def _pick_batch_tile(B, c_pad, hw_pad, target_bytes=6 << 20):
    """Batch tile from the VMEM byte budget; no divisor-of-B constraint."""
    per_batch = c_pad * hw_pad * 4                  # f32, sublane-padded C
    bt = max(1, int(target_bytes // per_batch))
    bt = min(bt, B)
    # Keep >= ~4 grid steps when possible so the "parallel" batch axis can be
    # sharded across both v7x TensorCores (for B < 8 this degrades gracefully
    # to >= 2 steps when B >= 2).
    bt = min(bt, max(1, B // 4))
    return bt


def non_local_forward(x_nchw, params):
    """x_nchw: (B, C, H, W) float32. Returns (B, C, H, W) float32."""
    B, C, H, W = x_nchw.shape
    HW = H * W
    HWp = ((HW + 127) // 128) * 128                 # lane-align the last dim
    Cp = max(8, ((C + 7) // 8) * 8)                 # sublane-padded slab rows

    x = x_nchw.astype(jnp.float32).reshape(B, C, HW)
    if HWp != HW:
        x = jnp.pad(x, ((0, 0), (0, 0), (0, HWp - HW)))

    # One small VMEM parameter slab: per-channel params in columns 0..6
    # (rows padded with zeros to Cp), scalar biases broadcast in columns 7..9.
    def padc(v):
        return jnp.pad(v.astype(jnp.float32), (0, Cp - C))

    slab = jnp.stack(
        [padc(params["w_theta"]), padc(params["w_phi"]), padc(params["w_g"]),
         padc(params["w_W"]), padc(params["b_W"]),
         padc(params["bn_scale"]), padc(params["bn_shift"]),
         jnp.full((Cp,), params["b_theta"], jnp.float32),
         jnp.full((Cp,), params["b_phi"], jnp.float32),
         jnp.full((Cp,), params["b_g"], jnp.float32)],
        axis=1)                                                  # (Cp, 10)

    Bt = _pick_batch_tile(B, Cp, HWp)
    num_steps = pl.cdiv(B, Bt)                       # ragged last block is OK

    # Explicit VMEM accounting: x block + out block, each double-buffered by
    # the BlockSpec pipeline (~4x block), + slab + headroom.  Cap at 32 MiB so
    # the same tiling is safe on v7x (64 MiB physical VMEM per TC).
    block_bytes = Bt * Cp * HWp * 4
    vmem_limit = int(min(32 << 20, max(4 << 20, 4 * block_bytes + (2 << 20))))

    kernel = functools.partial(_nonlocal_kernel, c=C, hw_true=HW)

    out = pl.pallas_call(
        kernel,
        out_shape=jax.ShapeDtypeStruct((B, C, HWp), jnp.float32),
        grid_spec=pltpu.PrefetchScalarGridSpec(
            num_scalar_prefetch=0,
            grid=(num_steps,),
            in_specs=[
                pl.BlockSpec((Bt, C, HWp), lambda b: (b, 0, 0)),   # x
                pl.BlockSpec((Cp, 10), lambda b: (0, 0)),          # param slab
            ],
            out_specs=pl.BlockSpec((Bt, C, HWp), lambda b: (b, 0, 0)),
        ),
        compiler_params=pltpu.CompilerParams(
            dimension_semantics=("parallel",),
            vmem_limit_bytes=vmem_limit),
    )(x, slab)

    if HWp != HW:
        out = out[:, :, :HW]
    return out.reshape(B, C, H, W)


def _reference_forward(x_nchw, params):
    """Pure-JAX reference mirroring the PyTorch forward (eval-mode BN)."""
    B, C, H, W = x_nchw.shape
    HW = H * W
    x = jnp.transpose(x_nchw.reshape(B, C, HW), (0, 2, 1))            # (B, HW, C)
    theta = x @ params["w_theta"][:, None] + params["b_theta"]        # (B, HW, 1)
    phi = x @ params["w_phi"][:, None] + params["b_phi"]              # (B, HW, 1)
    g = x @ params["w_g"][:, None] + params["b_g"]                    # (B, HW, 1)
    f = jnp.einsum("bik,bjk->bij", theta, phi) / HW                   # (B, HW, HW)
    y = jnp.einsum("bij,bjk->bik", f, g)                              # (B, HW, 1)
    w_y = y @ params["w_W"].reshape(1, C) + params["b_W"]             # (B, HW, C)
    w_y = w_y * params["bn_scale"] + params["bn_shift"]
    z = w_y + x
    return jnp.transpose(z, (0, 2, 1)).reshape(B, C, H, W)


def init_params(key, in_channels, bn_identity=True):
    """Deterministic synthetic parameters matching the module's shapes."""
    C = in_channels
    k = jax.random.split(key, 10)
    scale = 1.0 / jnp.sqrt(jnp.float32(C))
    # Conv2d(C->1, k=1) weights flattened to (C,); Conv2d(1->C, k=1) -> (C,).
    w_theta = jax.random.uniform(k[0], (C,), jnp.float32, -scale, scale)
    b_theta = jax.random.uniform(k[1], (), jnp.float32, -scale, scale)
    w_phi = jax.random.uniform(k[2], (C,), jnp.float32, -scale, scale)
    b_phi = jax.random.uniform(k[3], (), jnp.float32, -scale, scale)
    w_g = jax.random.uniform(k[4], (C,), jnp.float32, -scale, scale)
    b_g = jax.random.uniform(k[5], (), jnp.float32, -scale, scale)
    w_W = jax.random.uniform(k[6], (C,), jnp.float32, -1.0, 1.0)
    b_W = jax.random.uniform(k[7], (C,), jnp.float32, -1.0, 1.0)
    eps = 1e-5
    if bn_identity:
        # PyTorch init: BN weight=0, bias=0 (nn.init.constant_), stats 0/1.
        gamma = jnp.zeros((C,), jnp.float32)
        beta = jnp.zeros((C,), jnp.float32)
    else:
        # Non-degenerate affine, used only to exercise the full math path.
        gamma = jax.random.uniform(k[8], (C,), jnp.float32, 0.5, 1.5)
        beta = jax.random.uniform(k[9], (C,), jnp.float32, -0.5, 0.5)
    mean = jnp.zeros((C,), jnp.float32)
    var = jnp.ones((C,), jnp.float32)
    inv_std = 1.0 / jnp.sqrt(var + eps)
    bn_scale = gamma * inv_std
    bn_shift = beta - mean * gamma * inv_std
    return {
        "w_theta": w_theta, "b_theta": b_theta,
        "w_phi": w_phi, "b_phi": b_phi,
        "w_g": w_g, "b_g": b_g,
        "w_W": w_W, "b_W": b_W,
        "bn_scale": bn_scale, "bn_shift": bn_shift,
    }


if __name__ == "__main__":
    key = jax.random.PRNGKey(0)
    kx, kp, kp2, kx2 = jax.random.split(key, 4)

    B, C, H, W = 2, 4, 16, 16
    x = jax.random.normal(kx, (B, C, H, W), jnp.float32)

    # 1) Parameters matching the PyTorch init (BN gamma=beta=0 => identity).
    params = init_params(kp, C, bn_identity=True)
    out = jax.block_until_ready(non_local_forward(x, params))
    ref = _reference_forward(x, params)
    assert out.shape == (B, C, H, W)
    assert jnp.allclose(out, ref, atol=1e-4, rtol=1e-4)
    assert jnp.allclose(out, x, atol=1e-4, rtol=1e-4)  # zero-init BN => identity

    # 2) Non-degenerate BN affine to validate the rank-1 attention math.
    params2 = init_params(kp2, C, bn_identity=False)
    out2 = jax.block_until_ready(non_local_forward(x, params2))
    ref2 = _reference_forward(x, params2)
    assert jnp.allclose(out2, ref2, atol=1e-4, rtol=1e-4)

    # 3) Non-128-aligned spatial size to exercise the lane-padding/mask path.
    x3 = jax.random.normal(kx2, (2, 4, 10, 10), jnp.float32)   # HW = 100 -> 128
    out3 = jax.block_until_ready(non_local_forward(x3, params2))
    ref3 = _reference_forward(x3, params2)
    assert jnp.allclose(out3, ref3, atol=1e-4, rtol=1e-4)

    print("KERNEL_OK")
</pallas_src>

<mosaic_0001>
module attributes {stable_mosaic.version = 11 : i64} {
  func.func @_nonlocal_kernel(%arg0: i32, %arg1: memref<1x4x256xf32, #tpu.memory_space<vmem>>, %arg2: memref<8x10xf32, #tpu.memory_space<vmem>>, %arg3: memref<1x4x256xf32, #tpu.memory_space<vmem>>) attributes {dimension_semantics = [#tpu.dimension_semantics<parallel>], iteration_bounds = array<i64: 2>, scalar_prefetch = 0 : i64, scratch_operands = 0 : i64, tpu.core_type = #tpu.core_type<tc>, window_params = [{transform_indices = @transform_0, window_bounds = array<i64: 1, 4, 256>}, {pipeline_mode = #tpu.pipeline_mode<synchronous>, transform_indices = @transform_1, window_bounds = array<i64: 8, 10>}, {transform_indices = @transform_2, window_bounds = array<i64: 1, 4, 256>}]} {
    %c0 = arith.constant 0 : index
    %c0_0 = arith.constant 0 : index
    %c0_1 = arith.constant 0 : index
    %0 = vector.load %arg1[%c0, %c0_0, %c0_1] : memref<1x4x256xf32, #tpu.memory_space<vmem>>, vector<1x4x256xf32>
    %c0_2 = arith.constant 0 : index
    %c0_3 = arith.constant 0 : index
    %1 = vector.load %arg2[%c0_2, %c0_3] : memref<8x10xf32, #tpu.memory_space<vmem>>, vector<8x10xf32>
    %2 = vector.extract_strided_slice %1 {offsets = [0, 0], sizes = [4, 1], strides = [1, 1]} : vector<8x10xf32> to vector<4x1xf32>
    %3 = vector.extract_strided_slice %1 {offsets = [0, 1], sizes = [4, 1], strides = [1, 1]} : vector<8x10xf32> to vector<4x1xf32>
    %4 = vector.extract_strided_slice %1 {offsets = [0, 2], sizes = [4, 1], strides = [1, 1]} : vector<8x10xf32> to vector<4x1xf32>
    %5 = vector.extract_strided_slice %1 {offsets = [0, 3], sizes = [4, 1], strides = [1, 1]} : vector<8x10xf32> to vector<4x1xf32>
    %6 = vector.extract_strided_slice %1 {offsets = [0, 4], sizes = [4, 1], strides = [1, 1]} : vector<8x10xf32> to vector<4x1xf32>
    %7 = vector.extract_strided_slice %1 {offsets = [0, 5], sizes = [4, 1], strides = [1, 1]} : vector<8x10xf32> to vector<4x1xf32>
    %8 = vector.extract_strided_slice %1 {offsets = [0, 6], sizes = [4, 1], strides = [1, 1]} : vector<8x10xf32> to vector<4x1xf32>
    %9 = vector.extract_strided_slice %1 {offsets = [0, 7], sizes = [1, 1], strides = [1, 1]} : vector<8x10xf32> to vector<1x1xf32>
    %10 = vector.extract_strided_slice %1 {offsets = [0, 8], sizes = [1, 1], strides = [1, 1]} : vector<8x10xf32> to vector<1x1xf32>
    %11 = vector.extract_strided_slice %1 {offsets = [0, 9], sizes = [1, 1], strides = [1, 1]} : vector<8x10xf32> to vector<1x1xf32>
    %12 = vector.shape_cast %2 : vector<4x1xf32> to vector<1x4x1xf32>
    %13 = vector.broadcast %12 : vector<1x4x1xf32> to vector<1x4x256xf32>
    %14 = arith.mulf %0, %13 : vector<1x4x256xf32>
    %cst = arith.constant dense<0.000000e+00> : vector<1x256xf32>
    %15 = vector.multi_reduction <add>, %14, %cst [1] : vector<1x4x256xf32> to vector<1x256xf32>
    %16 = vector.broadcast %9 : vector<1x1xf32> to vector<1x256xf32>
    %17 = arith.addf %15, %16 : vector<1x256xf32>
    %18 = vector.shape_cast %3 : vector<4x1xf32> to vector<1x4x1xf32>
    %19 = vector.broadcast %18 : vector<1x4x1xf32> to vector<1x4x256xf32>
    %20 = arith.mulf %0, %19 : vector<1x4x256xf32>
    %cst_4 = arith.constant dense<0.000000e+00> : vector<1x256xf32>
    %21 = vector.multi_reduction <add>, %20, %cst_4 [1] : vector<1x4x256xf32> to vector<1x256xf32>
    %22 = vector.broadcast %10 : vector<1x1xf32> to vector<1x256xf32>
    %23 = arith.addf %21, %22 : vector<1x256xf32>
    %24 = vector.shape_cast %4 : vector<4x1xf32> to vector<1x4x1xf32>
    %25 = vector.broadcast %24 : vector<1x4x1xf32> to vector<1x4x256xf32>
    %26 = arith.mulf %0, %25 : vector<1x4x256xf32>
    %cst_5 = arith.constant dense<0.000000e+00> : vector<1x256xf32>
    %27 = vector.multi_reduction <add>, %26, %cst_5 [1] : vector<1x4x256xf32> to vector<1x256xf32>
    %28 = vector.broadcast %11 : vector<1x1xf32> to vector<1x256xf32>
    %29 = arith.addf %27, %28 : vector<1x256xf32>
    %30 = arith.mulf %23, %29 : vector<1x256xf32>
    %cst_6 = arith.constant dense<0.000000e+00> : vector<1xf32>
    %31 = vector.multi_reduction <add>, %30, %cst_6 [1] : vector<1x256xf32> to vector<1xf32>
    %32 = vector.shape_cast %31 : vector<1xf32> to vector<1x1xf32>
    %cst_7 = arith.constant 3.906250e-03 : f32
    %33 = vector.broadcast %cst_7 : f32 to vector<1x1xf32>
    %34 = arith.mulf %32, %33 : vector<1x1xf32>
    %35 = vector.broadcast %34 : vector<1x1xf32> to vector<1x256xf32>
    %36 = arith.mulf %17, %35 : vector<1x256xf32>
    %37 = arith.mulf %5, %7 : vector<4x1xf32>
    %38 = arith.mulf %6, %7 : vector<4x1xf32>
    %39 = arith.addf %38, %8 : vector<4x1xf32>
    %40 = vector.shape_cast %36 : vector<1x256xf32> to vector<1x1x256xf32>
    %41 = vector.shape_cast %37 : vector<4x1xf32> to vector<1x4x1xf32>
    %42 = vector.broadcast %40 : vector<1x1x256xf32> to vector<1x4x256xf32>
    %43 = vector.broadcast %41 : vector<1x4x1xf32> to vector<1x4x256xf32>
    %44 = arith.mulf %42, %43 : vector<1x4x256xf32>
    %45 = arith.addf %0, %44 : vector<1x4x256xf32>
    %46 = vector.shape_cast %39 : vector<4x1xf32> to vector<1x4x1xf32>
    %47 = vector.broadcast %46 : vector<1x4x1xf32> to vector<1x4x256xf32>
    %48 = arith.addf %45, %47 : vector<1x4x256xf32>
    %c0_8 = arith.constant 0 : index
    %c0_9 = arith.constant 0 : index
    %c0_10 = arith.constant 0 : index
    %49 = vector.load %arg3[%c0_8, %c0_9, %c0_10] : memref<1x4x256xf32, #tpu.memory_space<vmem>>, vector<1x4x256xf32>
    tpu.vector_store %arg3[%c0_8, %c0_9, %c0_10], %48 {strides = array<i32>} : memref<1x4x256xf32, #tpu.memory_space<vmem>>, vector<1x4x256xf32>,
    return
  }
  func.func @transform_0(%arg0: i32) -> (i32, i32, i32) {
    %c0_i32 = arith.constant 0 : i32
    %c0_i32_0 = arith.constant 0 : i32
    %c0_i32_1 = arith.constant 0 : i32
    return %arg0, %c0_i32, %c0_i32_0 : i32, i32, i32
  }
  func.func @transform_1(%arg0: i32) -> (i32, i32) {
    %c0_i32 = arith.constant 0 : i32
    %c0_i32_0 = arith.constant 0 : i32
    %c0_i32_1 = arith.constant 0 : i32
    return %c0_i32, %c0_i32_0 : i32, i32
  }
  func.func @transform_2(%arg0: i32) -> (i32, i32, i32) {
    %c0_i32 = arith.constant 0 : i32
    %c0_i32_0 = arith.constant 0 : i32
    %c0_i32_1 = arith.constant 0 : i32
    return %arg0, %c0_i32, %c0_i32_0 : i32, i32, i32
  }
}

</mosaic_0001>

<llo_original>
// kernel: tpu_custom_call.1
$region0: #{tpu_custom_call.1}
  #allocation0 [shape = 'u32[]', space=smem, size = 0x4, offset = 0x4, fixed_abs, tag = 'smem constant byte address 0x4 - core index']
  #allocation1 [shape = 'u32[144,128]{1,0:T(1,128)}', space=vmem, size = 0x12000, scoped, tag = 'internal scratch']
  %s0 = inlined_call_operand.hbm [shape: f32[2,4,256], index: 0, kind: input, shape index: {}]
  %s1 = inlined_call_operand.hbm [shape: f32[8,10], index: 1, kind: input, shape index: {}]
  %s2 = inlined_call_operand.hbm [shape: f32[2,4,256], index: 2, kind: output, shape index: {}]
  %s3 = sld [smem:[#allocation0]]
  $region49: #{tpu_custom_call.1} parent=0
    _
  %s5 = ssub.s32 1, %s3
  %s6 = scalar_select 0, %s5, %s3
  $region1: #{tpu_custom_call.1} parent=0
    #allocation2 [shape = 'u8[8192]{0}', space=vmem, size = 0x2000, scoped, tag = 'input window, operand 0']
    #allocation3 [shape = 's32[2]{0}', space=sflag, size = 0x8, scoped, tag = 'scoped memory for tpu_custom_call.1']
    #allocation4 [shape = 's32[2]{0}', space=sflag, size = 0x8, scoped, tag = 'scoped memory for tpu_custom_call.1']
    #allocation5 [shape = 'u8[4096]{0}', space=vmem, size = 0x1000, scoped, tag = 'input window, operand 1, single buffered']
    #allocation6 [shape = 's32[1]{0}', space=sflag, size = 0x4, scoped, tag = 'scoped memory for tpu_custom_call.1']
    #allocation7 [shape = 'u8[8192]{0}', space=vmem, size = 0x2000, scoped, tag = 'output window, operand 0']
    %7 = vsyncpa [#allocation3], 0
    %s8 = scalar_lea.sflag [#allocation3], 1
    %9 = vsyncpa %s8, 0
    %10 = vsyncpa [#allocation6], 0
    %11 = vsyncpa [#allocation4], 0
    %s12 = scalar_lea.sflag [#allocation4], 1
    %13 = vsyncpa %s12, 0
    loop: start=0, step=1, limit=4
    $region2: #{tpu_custom_call.1} parent=1 // loop_pre_header
      _
    $region3: #{tpu_custom_call.1} parent=1 // loop_header
      %s15 = sphi 0, %s19
      %p16 = scmp.ge.s32.totalorder %s15, 4
      %s25 = sphi 0, %s27
      %s28 = sphi 0, %s25
      %s29 = sphi 0, %s28
      %s45 = sphi 0, %s29
      %s49 = sphi 0, %s49
      %s51 = sphi 0, %s49
      %s52 = sphi 0, %s51
      %s66 = sphi 0, %s52
      %s72 = sphi 0, %s74
      %s75 = sphi 0, %s72
      %s76 = sphi 0, %s75
      %s92 = sphi 0, %s76
    $region4: #{tpu_custom_call.1} parent=1 // loop_header_branch
      %18 = sbr.rel (%p16) target = $region8
    $region5: #{tpu_custom_call.1} parent=1 // loop_body
      %s20 = ssub.s32 %s15, 1
      %s21 = ssub.s32 %s15, 2
      %s22 = sadd.s32 %s15, 1
      %s23 = ssub.s32 %s15, %s22
      %p24 = scmp.eq.s32.totalorder %s23, 0
      %s26 = sadd.s32 %s25, 1
      %s27 = scalar_select %p24, %s25, %s26
      %p30 = pneg %p24
      %p31 = scmp.eq.s32.totalorder %s15, 1
      %p32 = por %p30, %p31
      %p33 = scmp.ne.s32.totalorder %s25, %s28
      %p34 = scmp.eq.s32.totalorder %s15, 0
      %p35 = por %p33, %p34
      %p36 = scmp.ne.s32.totalorder %s25, %s28
      %p37 = scmp.eq.s32.totalorder %s20, 1
      %p38 = por %p36, %p37
      %p39 = scmp.ne.s32.totalorder %s28, %s29
      %p40 = scmp.eq.s32.totalorder %s20, 0
      %p41 = por %p39, %p40
      %p42 = scmp.ne.s32.totalorder %s28, %s29
      %p43 = scmp.eq.s32.totalorder %s21, 1
      %p44 = por %p42, %p43
      %p46 = scmp.ne.s32.totalorder %s29, %s45
      %p47 = scmp.eq.s32.totalorder %s21, 0
      %p48 = por %p46, %p47
      %s50 = sadd.s32 %s49, 1
      %p53 = scmp.eq.s32.totalorder %s15, 1
      %p54 = scmp.ne.s32.totalorder %s49, %s51
      %p55 = scmp.eq.s32.totalorder %s15, 0
      %p56 = por %p54, %p55
      %p57 = scmp.ne.s32.totalorder %s49, %s51
      %p58 = scmp.eq.s32.totalorder %s20, 1
      %p59 = por %p57, %p58
      %p60 = scmp.ne.s32.totalorder %s51, %s52
      %p61 = scmp.eq.s32.totalorder %s20, 0
      %p62 = por %p60, %p61
      %p63 = scmp.ne.s32.totalorder %s51, %s52
      %p64 = scmp.eq.s32.totalorder %s21, 1
      %p65 = por %p63, %p64
      %p67 = scmp.ne.s32.totalorder %s52, %s66
      %p68 = scmp.eq.s32.totalorder %s21, 0
      %p69 = por %p67, %p68
      %s70 = ssub.s32 %s15, %s22
      %p71 = scmp.eq.s32.totalorder %s70, 0
      %s73 = sadd.s32 %s72, 1
      %s74 = scalar_select %p71, %s72, %s73
      %p77 = pneg %p71
      %p78 = scmp.eq.s32.totalorder %s15, 1
      %p79 = por %p77, %p78
      %p80 = scmp.ne.s32.totalorder %s72, %s75
      %p81 = scmp.eq.s32.totalorder %s15, 0
      %p82 = por %p80, %p81
      %p83 = scmp.ne.s32.totalorder %s72, %s75
      %p84 = scmp.eq.s32.totalorder %s20, 1
      %p85 = por %p83, %p84
      %p86 = scmp.ne.s32.totalorder %s75, %s76
      %p87 = scmp.eq.s32.totalorder %s20, 0
      %p88 = por %p86, %p87
      %p89 = scmp.ne.s32.totalorder %s75, %s76
      %p90 = scmp.eq.s32.totalorder %s21, 1
      %p91 = por %p89, %p90
      %p93 = scmp.ne.s32.totalorder %s76, %s92
      %p94 = scmp.eq.s32.totalorder %s21, 0
      %p95 = por %p93, %p94
      %p96 = scmp.le.s32.totalorder 1, %s15
      %p97 = scmp.lt.s32.totalorder %s15, 3
      %p98 = pnand %p96, %p97
      %p99 = pneg %p98
      // Predicated region
      $region9: #{tpu_custom_call.1} parent=5 // pred_check
        _
      $region10: #{tpu_custom_call.1} parent=5 // pred_check_branch
        %101 = sbr.rel (%p98) target = $region12
      $region11: #{tpu_custom_call.1} parent=5 // pred_region
        %s102 = ssub.s32 %s15, 1
        // Predicated region
        $region13: #{tpu_custom_call.1} parent=11 // pred_check
          %p103 = pneg %p62
        $region14: #{tpu_custom_call.1} parent=11 // pred_check_branch
          %105 = sbr.rel (%p103) target = $region16
        $region15: #{tpu_custom_call.1} parent=11 // pred_region
          %s107 = ssub.s32 128, 128
          %108 = vsyncadd [#allocation6], %s107
          %s110 = sshll.u32 [#allocation5], 4
          %s111 = int_to_ptr.vmem [resolvable:$true] %s110
          %113 = dma.hbm_to_vmem [thread:$0]  %s1, 128, %s111, [#allocation6]
        $region16: #{tpu_custom_call.1} parent=11 // pred_fallthru
          _
      $region12: #{tpu_custom_call.1} parent=5 // pred_fallthru
        _
      %p114 = scmp.lt.s32.totalorder %s15, 2
      // Predicated region
      $region17: #{tpu_custom_call.1} parent=5 // pred_check
        %p115 = pneg %p114
      $region18: #{tpu_custom_call.1} parent=5 // pred_check_branch
        %117 = sbr.rel (%p115) target = $region20
      $region19: #{tpu_custom_call.1} parent=5 // pred_region
        // Predicated region
        $region21: #{tpu_custom_call.1} parent=19 // pred_check
          %p118 = pneg %p35
        $region22: #{tpu_custom_call.1} parent=19 // pred_check_branch
          %120 = sbr.rel (%p118) target = $region24
        $region23: #{tpu_custom_call.1} parent=19 // pred_region
          %s121 = sand.u32 %s25, 1
          %s122 = scalar_lea.sflag [#allocation3], %s121
          %s123 = sand.u32 %s25, 1
          %s124 = smul.addr %s123, 8
          %s125 = scalar_lea.vmem [#allocation2], %s124
          %s127 = ssub.s32 128, 128
          %128 = vsyncadd %s122, %s127
          %s129 = smul.addr %s15, 2
          %s130 = smul.addr %s129, 64
          %s131 = scalar_lea.hbm %s0, %s130
          %s133 = sshll.u32 %s125, 4
          %s134 = int_to_ptr.vmem [resolvable:$true] %s133
          %136 = dma.hbm_to_vmem [thread:$0]  %s131, 128, %s134, %s122
        $region24: #{tpu_custom_call.1} parent=19 // pred_fallthru
          _
      $region20: #{tpu_custom_call.1} parent=5 // pred_fallthru
        _
      %p137 = scmp.le.s32.totalorder 1, %s15
      %p138 = scmp.lt.s32.totalorder %s15, 3
      %p139 = pnand %p137, %p138
      %p140 = pneg %p139
      // Predicated region
      $region25: #{tpu_custom_call.1} parent=5 // pred_check
        _
      $region26: #{tpu_custom_call.1} parent=5 // pred_check_branch
        %142 = sbr.rel (%p139) target = $region28
      $region27: #{tpu_custom_call.1} parent=5 // pred_region
        %s143 = ssub.s32 %s15, 1
        %s144 = sand.u32 %s28, 1
        %s145 = scalar_lea.sflag [#allocation3], %s144
        %s146 = sand.u32 %s28, 1
        %s147 = smul.addr %s146, 8
        %s148 = scalar_lea.vmem [#allocation2], %s147
        // Predicated region
        $region29: #{tpu_custom_call.1} parent=27 // pred_check
          %p149 = pneg %p41
        $region30: #{tpu_custom_call.1} parent=27 // pred_check_branch
          %151 = sbr.rel (%p149) target = $region32
        $region31: #{tpu_custom_call.1} parent=27 // pred_region
          %152 = dma.done %s145, 128
        $region32: #{tpu_custom_call.1} parent=27 // pred_fallthru
          _
        // Predicated region
        $region33: #{tpu_custom_call.1} parent=27 // pred_check
          %p153 = pneg %p62
        $region34: #{tpu_custom_call.1} parent=27 // pred_check_branch
          %155 = sbr.rel (%p153) target = $region36
        $region35: #{tpu_custom_call.1} parent=27 // pred_region
          %156 = dma.done [#allocation6], 128
        $region36: #{tpu_custom_call.1} parent=27 // pred_fallthru
          _
        %s157 = sand.u32 %s28, 1
        %s158 = scalar_lea.sflag [#allocation3], %s157
        %s159 = sand.u32 %s28, 1
        %s160 = smul.addr %s159, 8
        %s161 = scalar_lea.vmem [#allocation2], %s160
        %p162 = pneg %p41
        %p163 = pneg %p38
        %p164 = pneg %p62
        %p165 = pneg %p59
        %p166 = pneg %p88
        %p167 = pneg %p85
        %s168 = sand.u32 %s75, 1
        %s169 = scalar_lea.sflag [#allocation4], %s168
        %s170 = sand.u32 %s75, 1
        %s171 = smul.addr %s170, 8
        %s172 = scalar_lea.vmem [#allocation7], %s171
        %v173 = vld [vmem:[%s148] sm:$0xff]
        %v174 = vld [vmem:[#allocation5] sm:$0xff]
        %176 = vset.pattern.permute.xlu0 0
        %177 = vperm.xlu0 %176, %v174
        %v178 = vpop.permute.xlu0 %177
        %v180 = vunpack.c.l.s4 839922192
        %v181 = vunpack.c.0.s8 %v180
        %v182 = vlaneseq
        %v183 = vshrl.u32 %v182, 7
        %v184 = vsub.s32 %v181, %v183
        %v185 = vrot.slane %v178, %v184
        %v187 = vmul.f32 %v173, %v185
        %v189 = vcombine.high %v187, %v187
        %vm191 = vcmask 1043456
        %v192 = vsel %vm191, %v187, 0.0
        %v193 = vrot.slane %v192, 4
        %v194 = vadd.f32 %v192, %v193
        %v195 = vrot.slane %v194, 2
        %v196 = vadd.f32 %v194, %v195
        %v197 = vrot.slane %v196, 1
        %v198 = vadd.f32 %v196, %v197
        %v199 = vsel %vm191, %v189, 0.0
        %v200 = vrot.slane %v199, 4
        %v201 = vadd.f32 %v199, %v200
        %v202 = vrot.slane %v201, 2
        %v203 = vadd.f32 %v201, %v202
        %v204 = vrot.slane %v203, 1
        %v205 = vadd.f32 %v203, %v204
        %206 = vset.pattern.permute.xlu0 7
        %207 = vperm.xlu0 %206, %v174
        %v208 = vpop.permute.xlu0 %207
        %v210 = vadd.f32 %v198, %v208
        %v211 = vadd.f32 %v205, %v208
        %212 = vset.pattern.permute.xlu0 1
        %213 = vperm.xlu0 %212, %v174
        %v214 = vpop.permute.xlu0 %213
        %v216 = vunpack.c.l.s4 839922192
        %v217 = vunpack.c.0.s8 %v216
        %v218 = vlaneseq
        %v219 = vshrl.u32 %v218, 7
        %v220 = vsub.s32 %v217, %v219
        %v221 = vrot.slane %v214, %v220
        %v223 = vmul.f32 %v173, %v221
        %v225 = vcombine.high %v223, %v223
        %v227 = vsel %vm191, %v223, 0.0
        %v228 = vrot.slane %v227, 4
        %v229 = vadd.f32 %v227, %v228
        %v230 = vrot.slane %v229, 2
        %v231 = vadd.f32 %v229, %v230
        %v232 = vrot.slane %v231, 1
        %v233 = vadd.f32 %v231, %v232
        %v234 = vsel %vm191, %v225, 0.0
        %v235 = vrot.slane %v234, 4
        %v236 = vadd.f32 %v234, %v235
        %v237 = vrot.slane %v236, 2
        %v238 = vadd.f32 %v236, %v237
        %v239 = vrot.slane %v238, 1
        %v240 = vadd.f32 %v238, %v239
        %241 = vset.pattern.permute.xlu0 8
        %242 = vperm.xlu0 %241, %v174
        %v243 = vpop.permute.xlu0 %242
        %v245 = vadd.f32 %v233, %v243
        %v246 = vadd.f32 %v240, %v243
        %247 = vset.pattern.permute.xlu0 2
        %248 = vperm.xlu0 %247, %v174
        %v249 = vpop.permute.xlu0 %248
        %v251 = vunpack.c.l.s4 839922192
        %v252 = vunpack.c.0.s8 %v251
        %v253 = vlaneseq
        %v254 = vshrl.u32 %v253, 7
        %v255 = vsub.s32 %v252, %v254
        %v256 = vrot.slane %v249, %v255
        %v258 = vmul.f32 %v173, %v256
        %v260 = vcombine.high %v258, %v258
        %v262 = vsel %vm191, %v258, 0.0
        %v263 = vrot.slane %v262, 4
        %v264 = vadd.f32 %v262, %v263
        %v265 = vrot.slane %v264, 2
        %v266 = vadd.f32 %v264, %v265
        %v267 = vrot.slane %v266, 1
        %v268 = vadd.f32 %v266, %v267
        %v269 = vsel %vm191, %v260, 0.0
        %v270 = vrot.slane %v269, 4
        %v271 = vadd.f32 %v269, %v270
        %v272 = vrot.slane %v271, 2
        %v273 = vadd.f32 %v271, %v272
        %v274 = vrot.slane %v273, 1
        %v275 = vadd.f32 %v273, %v274
        %276 = vset.pattern.permute.xlu0 9
        %277 = vperm.xlu0 %276, %v174
        %v278 = vpop.permute.xlu0 %277
        %v280 = vadd.f32 %v268, %v278
        %v281 = vadd.f32 %v275, %v278
        %v282 = vmul.f32 %v245, %v280
        %v283 = vmul.f32 %v246, %v281
        %vm284 = vcmask 1040384
        %v285 = vsel %vm284, %v282, 0.0
        %v286 = vsel %vm284, %v283, 0.0
        %v287 = vadd.f32 %v285, %v286
        %288 = vadd.xlane.f32.xlu0 %v287
        %v289 = vpop.xlane.xlu0 %288
        %v290 = vmul.f32 %v289, 0.00390625
        %v291 = vmul.f32 %v210, %v290
        %v292 = vmul.f32 %v211, %v290
        %293 = vrot.lane.b32.xlu0 %v174, 126
        %v294 = vpop.permute.xlu0 %293
        %v296 = vmul.f32 %v174, %v294
        %297 = vrot.lane.b32.xlu0 %v174, 127
        %v298 = vpop.permute.xlu0 %297
        %v300 = vmul.f32 %v174, %v298
        %v301 = vadd.f32 %v300, %v294
        %v302 = vlaneseq
        %v303 = vshrl.u32 %v302, 7
        %v304 = vsub.s32 0, %v303
        %v305 = vrot.slane %v291, %v304
        %v306 = vlaneseq
        %v307 = vshrl.u32 %v306, 7
        %v308 = vsub.s32 0, %v307
        %v309 = vrot.slane %v292, %v308
        %311 = vset.pattern.permute.xlu0 3
        %312 = vperm.xlu0 %311, %v296
        %v313 = vpop.permute.xlu0 %312
        %v315 = vmul.f32 %v305, %v313
        %v316 = vmul.f32 %v309, %v313
        %v319 = vcombine.low %v315, %v316
        %v321 = vadd.f32 %v173, %v319
        %323 = vset.pattern.permute.xlu0 4
        %324 = vperm.xlu0 %323, %v301
        %v325 = vpop.permute.xlu0 %324
        %v327 = vunpack.c.l.s4 839922192
        %v328 = vunpack.c.0.s8 %v327
        %v329 = vlaneseq
        %v330 = vshrl.u32 %v329, 7
        %v331 = vsub.s32 %v328, %v330
        %v332 = vrot.slane %v325, %v331
        %v334 = vadd.f32 %v321, %v332
        %335 = vst [vmem:[%s172] sm:$0xff] %v334
        %s336 = sand.u32 %s75, 1
        %s337 = scalar_lea.sflag [#allocation4], %s336
        %s338 = sand.u32 %s75, 1
        %s339 = smul.addr %s338, 8
        %s340 = scalar_lea.vmem [#allocation7], %s339
        // Predicated region
        $region37: #{tpu_custom_call.1} parent=27 // pred_check
          %p341 = pneg %p85
        $region38: #{tpu_custom_call.1} parent=27 // pred_check_branch
          %343 = sbr.rel (%p341) target = $region40
        $region39: #{tpu_custom_call.1} parent=27 // pred_region
          %s345 = ssub.s32 128, 128
          %346 = vsyncadd %s337, %s345
          %s347 = smul.addr %s20, 2
          %s348 = smul.addr %s347, 64
          %s349 = scalar_lea.hbm %s2, %s348
          %s351 = sshll.u32 %s340, 4
          %s352 = int_to_ptr.vmem [resolvable:$true] %s351
          %354 = dma.vmem_to_hbm [thread:$0]  %s352, 128, %s349, %s337
        $region40: #{tpu_custom_call.1} parent=27 // pred_fallthru
          _
      $region28: #{tpu_custom_call.1} parent=5 // pred_fallthru
        _
      %p355 = scmp.le.s32.totalorder 2, %s15
      // Predicated region
      $region41: #{tpu_custom_call.1} parent=5 // pred_check
        %p356 = pneg %p355
      $region42: #{tpu_custom_call.1} parent=5 // pred_check_branch
        %358 = sbr.rel (%p356) target = $region44
      $region43: #{tpu_custom_call.1} parent=5 // pred_region
        %s359 = ssub.s32 %s15, 2
        // Predicated region
        $region45: #{tpu_custom_call.1} parent=43 // pred_check
          %p360 = pneg %p91
        $region46: #{tpu_custom_call.1} parent=43 // pred_check_branch
          %362 = sbr.rel (%p360) target = $region48
        $region47: #{tpu_custom_call.1} parent=43 // pred_region
          %s363 = sand.u32 %s76, 1
          %s364 = scalar_lea.sflag [#allocation4], %s363
          %s365 = sand.u32 %s76, 1
          %s366 = smul.addr %s365, 8
          %s367 = scalar_lea.vmem [#allocation7], %s366
          %368 = dma.done %s364, 128
        $region48: #{tpu_custom_call.1} parent=43 // pred_fallthru
          _
      $region44: #{tpu_custom_call.1} parent=5 // pred_fallthru
        _
    $region6: #{tpu_custom_call.1} parent=1 // loop_footer
      %s19 = sadd.s32 1, %s15
    $region7: #{tpu_custom_call.1} parent=1 // loop_footer_branch
      %14 = sbr.rel target = $region3
    $region8: #{tpu_custom_call.1} parent=1 // loop_exit
      _
    %369 = vsyncpa [#allocation3], 1
    %s370 = scalar_lea.sflag [#allocation3], 1
    %371 = vsyncpa %s370, 1
    %372 = vsyncpa [#allocation6], 1
    %373 = vsyncpa [#allocation4], 1
    %s374 = scalar_lea.sflag [#allocation4], 1
    %375 = vsyncpa %s374, 1

</llo_original>
